<compile_context>
chip_gen: v7x
topology: tpu7x:2x2x1
jax: 0.10.0
libtpu: 0.0.40
codegen_flags: <defaults>
</compile_context>

<pallas_src>
import numpy as np
import jax
import jax.numpy as jnp
from jax.experimental import pallas as pl
from jax.experimental.pallas import tpu as pltpu

LN_EPS = 1e-5
LANE = 128
SUBLANE = 8
# bf16 operands on the MXU (fp32 accumulation). Pass matmul_dtype=jnp.float32 to
# prepare_params() for strict fp32-GEMM parity with the PyTorch reference.
MATMUL_DTYPE = jnp.bfloat16
# TODO(synk): flip only if the model owner accepts tanh-approx GELU (torch default is exact erf).
USE_TANH_GELU = False


def _round_up(x, m):
    return ((x + m - 1) // m) * m


# ----------------------------- kernel math helpers ---------------------------
def _gelu(x):
    if USE_TANH_GELU:
        return jax.nn.gelu(x, approximate=True)          # tanh -> EUP slot
    # exact erf GELU (torch.nn.GELU default); fp32 on the VPU.
    return 0.5 * x * (1.0 + jax.lax.erf(x * 0.7071067811865475))


def _layernorm(x, gamma, beta):
    # One-pass statistics: both reductions depend only on x (shorter serial chain).
    n = x.shape[-1]
    inv_n = 1.0 / n
    s1 = jnp.sum(x, axis=-1, keepdims=True)
    s2 = jnp.sum(x * x, axis=-1, keepdims=True)
    mean = s1 * inv_n
    var = jnp.maximum(s2 * inv_n - mean * mean, 0.0)       # clamp fp32 cancellation
    return (x - mean) * jax.lax.rsqrt(var + LN_EPS) * gamma + beta


def _mxu_dot(x, w):
    # operands in the slab dtype (bf16 by default) on the MXU, fp32 accumulation.
    return jnp.dot(x.astype(w.dtype), w, preferred_element_type=jnp.float32)


# ------------------------------ fused kernel ---------------------------------
def _build_fused_kernel(plan):
    """Kernel body unrolling the static layer `plan`.

    Refs: (x_ref, w_slab_ref, v_slab_ref, o_ref).
    plan entries hold static (row_offset, rows, cols) for weights and
    (row_offset, cols) for bias/gamma/beta vectors inside the two slabs.
    """
    def kernel(x_ref, w_ref, v_ref, o_ref):
        def W(e):                                   # weight tile (rows, cols)
            r0, rows, cols = e
            return w_ref[pl.ds(r0, rows), pl.ds(0, cols)]

        def V(e):                                   # (1, cols) vector
            r0, cols = e
            return v_ref[pl.ds(r0, 1), pl.ds(0, cols)]

        x = x_ref[...]                              # fp32, stays in vregs/VMEM
        for kind, e in plan:
            if kind == "block":
                h = _mxu_dot(x, W(e["w1"])) + V(e["b1"])
                h = _layernorm(_gelu(h), V(e["g1"]), V(e["be1"]))   # Dropout = identity
                h = _mxu_dot(h, W(e["w2"])) + V(e["b2"])
                h = _layernorm(_gelu(h), V(e["g2"]), V(e["be2"]))   # Dropout = identity
                x = x + h                                           # residual, in-vreg
            elif kind == "linear_ln":
                x = _layernorm(_mxu_dot(x, W(e["w"])) + V(e["b"]),
                               V(e["g"]), V(e["be"]))
            else:  # "linear": lane-padded output head (128-wide unmasked store)
                x = _mxu_dot(x, W(e["w"])) + V(e["b"])
        o_ref[...] = x.astype(o_ref.dtype)

    return kernel


# --------------------------- init-time param packing --------------------------
def prepare_params(layers, out_layer, matmul_dtype=MATMUL_DTYPE):
    """Pack all parameters into two slabs once (casts + pads hoisted out of forward)."""
    out_dim = int(out_layer["w"].shape[1])
    padded_out = _round_up(out_dim, LANE)

    w_raw, v_raw = [], []

    def add_w(a):
        w_raw.append(a)
        return len(w_raw) - 1

    def add_v(a):
        v_raw.append(a)
        return len(v_raw) - 1

    plan_idx = []
    for kind, p in layers:
        if kind == "block":
            plan_idx.append((kind, dict(
                w1=add_w(p["w1"]), b1=add_v(p["b1"]), g1=add_v(p["g1"]), be1=add_v(p["be1"]),
                w2=add_w(p["w2"]), b2=add_v(p["b2"]), g2=add_v(p["g2"]), be2=add_v(p["be2"]))))
        else:
            plan_idx.append((kind, dict(w=add_w(p["w"]), b=add_v(p["b"]),
                                        g=add_v(p["g"]), be=add_v(p["be"]))))
    # output head: zero-pad to a full 128-lane store (padded cols are exactly zero)
    ow = jnp.pad(out_layer["w"], ((0, 0), (0, padded_out - out_dim)))
    ob = jnp.pad(out_layer["b"], ((0, 0), (0, padded_out - out_dim)))
    plan_idx.append(("linear", dict(w=add_w(ow), b=add_v(ob))))

    # weight slab: each weight padded to (round8(rows), W_COLS), row-concatenated.
    w_cols = max(_round_up(int(w.shape[1]), LANE) for w in w_raw)
    w_info, w_parts, r = [], [], 0
    for w in w_raw:
        rows, cols = int(w.shape[0]), int(w.shape[1])
        rp = _round_up(rows, SUBLANE)
        w_info.append((r, rows, cols))
        w_parts.append(jnp.pad(w, ((0, rp - rows), (0, w_cols - cols))))
        r += rp
    w_slab = jnp.concatenate(w_parts, axis=0).astype(matmul_dtype)

    # vector slab: one 8-row stripe per (1, N) bias/gamma/beta, fp32.
    v_cols = max(_round_up(int(v.shape[1]), LANE) for v in v_raw)
    v_info, v_parts, r = [], [], 0
    for v in v_raw:
        cols = int(v.shape[1])
        v_info.append((r, cols))
        v_parts.append(jnp.pad(v, ((0, SUBLANE - 1), (0, v_cols - cols))))
        r += SUBLANE
    v_slab = jnp.concatenate(v_parts, axis=0).astype(jnp.float32)

    # resolve indices -> static (offset, shape) entries
    plan = []
    for kind, d in plan_idx:
        plan.append((kind, {k: (w_info[i] if k in ("w", "w1", "w2") else v_info[i])
                            for k, i in d.items()}))

    return dict(plan=tuple(plan), w_slab=w_slab, v_slab=v_slab,
                out_dim=out_dim, padded_out=padded_out)


# ------------------------------ forward (1 custom call) -----------------------
def task_specific_network_fwd(prepared, x):
    B = x.shape[0]
    vmem = pl.BlockSpec(memory_space=pltpu.MemorySpace.VMEM)
    out = pl.pallas_call(
        _build_fused_kernel(prepared["plan"]),
        out_shape=jax.ShapeDtypeStruct((B, prepared["padded_out"]), jnp.float32),
        in_specs=[vmem, vmem, vmem],      # 3 DMAs total: x + 2 parameter slabs
        out_specs=vmem,
        # grid=(): whole problem fits in VMEM; for large B add a "parallel" batch axis.
    )(x, prepared["w_slab"], prepared["v_slab"])
    return out[:, :prepared["out_dim"]]


# ------------------------------ parameter setup -------------------------------
def _linear_init(key, fan_in, fan_out):
    kw, kb = jax.random.split(key)
    bound = 1.0 / np.sqrt(fan_in)
    w = jax.random.uniform(kw, (fan_in, fan_out), jnp.float32, -bound, bound)
    b = jax.random.uniform(kb, (1, fan_out), jnp.float32, -bound, bound)
    return w, b


def _ln_init(dim):
    return jnp.ones((1, dim), jnp.float32), jnp.zeros((1, dim), jnp.float32)


def _progressive_dims(input_dim, target_dim, num_layers):
    if num_layers <= 1:
        return [target_dim]
    dims = np.logspace(np.log10(input_dim), np.log10(target_dim), num_layers)
    return [int(d) for d in dims[1:]]


def init_task_specific_network(key, input_dim, output_dim, intermediate_dim,
                               num_layers, bottleneck_factor=4):
    dims = _progressive_dims(input_dim, intermediate_dim, num_layers)
    layers = []  # list of ("block"|"linear_ln", params)
    current_dim = input_dim
    for i, dim in enumerate(dims):
        bneck = current_dim // bottleneck_factor
        key, k1, k2 = jax.random.split(key, 3)
        w1, b1 = _linear_init(k1, current_dim, bneck)
        w2, b2 = _linear_init(k2, bneck, current_dim)
        g1, be1 = _ln_init(bneck)
        g2, be2 = _ln_init(current_dim)
        layers.append(("block", dict(w1=w1, b1=b1, g1=g1, be1=be1,
                                     w2=w2, b2=b2, g2=g2, be2=be2)))
        if i < len(dims) - 1:
            key, k = jax.random.split(key)
            w, b = _linear_init(k, current_dim, dim)
            g, be = _ln_init(dim)
            layers.append(("linear_ln", dict(w=w, b=b, g=g, be=be)))
            current_dim = dim
    key, k = jax.random.split(key)
    ow, ob = _linear_init(k, current_dim, output_dim)
    out_layer = dict(w=ow, b=ob)
    return layers, out_layer


# ----------------------------- pure-JAX fp32 reference ------------------------
# True fp32 reference (no bf16 casts) mirroring the PyTorch module semantics.
def _ref_forward(layers, out_layer, x):
    def ln(h, g, b):
        m = jnp.mean(h, -1, keepdims=True)
        v = jnp.mean((h - m) ** 2, -1, keepdims=True)
        return (h - m) * jax.lax.rsqrt(v + LN_EPS) * g + b

    def gelu(h):
        return 0.5 * h * (1.0 + jax.lax.erf(h * 0.7071067811865475))

    for kind, p in layers:
        if kind == "block":
            h = ln(gelu(x @ p["w1"] + p["b1"]), p["g1"], p["be1"])
            h = ln(gelu(h @ p["w2"] + p["b2"]), p["g2"], p["be2"])
            x = x + h
        else:
            x = ln(x @ p["w"] + p["b"], p["g"], p["be"])
    return x @ out_layer["w"] + out_layer["b"]


# ----------------------------------- main --------------------------------------
if __name__ == "__main__":
    INPUT_DIM = 64
    OUTPUT_DIM = 8
    INTERMEDIATE_DIM = 16
    NUM_LAYERS = 3
    BATCH = 16

    key = jax.random.PRNGKey(0)
    key_x, key_p = jax.random.split(key)
    x = jax.random.normal(key_x, (BATCH, INPUT_DIM), jnp.float32)

    layers, out_layer = init_task_specific_network(
        key_p, INPUT_DIM, OUTPUT_DIM, INTERMEDIATE_DIM, NUM_LAYERS)

    ref = _ref_forward(layers, out_layer, x)

    # (1) strict fp32-GEMM kernel vs true fp32 reference: validates fused logic.
    prepared_f32 = prepare_params(layers, out_layer, matmul_dtype=jnp.float32)
    out_f32 = jax.block_until_ready(task_specific_network_fwd(prepared_f32, x))
    np.testing.assert_allclose(np.asarray(out_f32), np.asarray(ref),
                               rtol=1e-3, atol=1e-3)

    # (2) production bf16-MXU path vs true fp32 reference: bounded drift.
    prepared = prepare_params(layers, out_layer)          # init-time packing/casts
    out = jax.block_until_ready(task_specific_network_fwd(prepared, x))
    assert out.shape == (BATCH, OUTPUT_DIM)
    np.testing.assert_allclose(np.asarray(out), np.asarray(ref),
                               rtol=5e-2, atol=5e-2)

    print("KERNEL_OK")
</pallas_src>

<mosaic_0001>
module attributes {stable_mosaic.version = 11 : i64} {
  func.func @kernel(%arg0: memref<16x64xf32, #tpu.memory_space<vmem>>, %arg1: memref<216x128xf32, #tpu.memory_space<vmem>>, %arg2: memref<128x128xf32, #tpu.memory_space<vmem>>, %arg3: memref<16x128xf32, #tpu.memory_space<vmem>>) attributes {dimension_semantics = [], scalar_prefetch = 0 : i64, scratch_operands = 0 : i64, tpu.core_type = #tpu.core_type<tc>} {
    %c0 = arith.constant 0 : index
    %c0_0 = arith.constant 0 : index
    %0 = vector.load %arg0[%c0, %c0_0] : memref<16x64xf32, #tpu.memory_space<vmem>>, vector<16x64xf32>
    %c0_1 = arith.constant 0 : index
    %c0_2 = arith.constant 0 : index
    %1 = vector.load %arg1[%c0_1, %c0_2] : memref<216x128xf32, #tpu.memory_space<vmem>>, vector<64x16xf32>
    %cst = arith.constant dense<0.000000e+00> : vector<16x16xf32>
    %2 = tpu.matmul %0, %1, %cst {dimension_numbers = #tpu.dot_dimension_numbers<[1], [0], [0], [1], [0, 0, 1, 1], [], []>} : vector<16x64xf32>, vector<64x16xf32>, vector<16x16xf32> -> vector<16x16xf32>
    %c0_3 = arith.constant 0 : index
    %c0_4 = arith.constant 0 : index
    %3 = vector.load %arg2[%c0_3, %c0_4] : memref<128x128xf32, #tpu.memory_space<vmem>>, vector<1x16xf32>
    %4 = vector.broadcast %3 : vector<1x16xf32> to vector<16x16xf32>
    %5 = arith.addf %2, %4 : vector<16x16xf32>
    %cst_5 = arith.constant 5.000000e-01 : f32
    %6 = vector.broadcast %cst_5 : f32 to vector<16x16xf32>
    %7 = arith.mulf %6, %5 : vector<16x16xf32>
    %cst_6 = arith.constant 0.707106769 : f32
    %8 = vector.broadcast %cst_6 : f32 to vector<16x16xf32>
    %9 = arith.mulf %5, %8 : vector<16x16xf32>
    %10 = math.erf %9 : vector<16x16xf32>
    %cst_7 = arith.constant 1.000000e+00 : f32
    %11 = vector.broadcast %cst_7 : f32 to vector<16x16xf32>
    %12 = arith.addf %11, %10 : vector<16x16xf32>
    %13 = arith.mulf %7, %12 : vector<16x16xf32>
    %c8 = arith.constant 8 : index
    %c0_8 = arith.constant 0 : index
    %14 = vector.load %arg2[%c8, %c0_8] : memref<128x128xf32, #tpu.memory_space<vmem>>, vector<1x16xf32>
    %c16 = arith.constant 16 : index
    %c0_9 = arith.constant 0 : index
    %15 = vector.load %arg2[%c16, %c0_9] : memref<128x128xf32, #tpu.memory_space<vmem>>, vector<1x16xf32>
    %cst_10 = arith.constant dense<0.000000e+00> : vector<16xf32>
    %16 = vector.multi_reduction <add>, %13, %cst_10 [1] : vector<16x16xf32> to vector<16xf32>
    %17 = vector.shape_cast %16 : vector<16xf32> to vector<16x1xf32>
    %18 = arith.mulf %13, %13 : vector<16x16xf32>
    %cst_11 = arith.constant dense<0.000000e+00> : vector<16xf32>
    %19 = vector.multi_reduction <add>, %18, %cst_11 [1] : vector<16x16xf32> to vector<16xf32>
    %20 = vector.shape_cast %19 : vector<16xf32> to vector<16x1xf32>
    %cst_12 = arith.constant 6.250000e-02 : f32
    %21 = vector.broadcast %cst_12 : f32 to vector<16x1xf32>
    %22 = arith.mulf %17, %21 : vector<16x1xf32>
    %cst_13 = arith.constant 6.250000e-02 : f32
    %23 = vector.broadcast %cst_13 : f32 to vector<16x1xf32>
    %24 = arith.mulf %20, %23 : vector<16x1xf32>
    %25 = arith.mulf %22, %22 : vector<16x1xf32>
    %26 = arith.subf %24, %25 : vector<16x1xf32>
    %cst_14 = arith.constant 0.000000e+00 : f32
    %27 = vector.broadcast %cst_14 : f32 to vector<16x1xf32>
    %28 = arith.maximumf %26, %27 : vector<16x1xf32>
    %29 = vector.broadcast %22 : vector<16x1xf32> to vector<16x16xf32>
    %30 = arith.subf %13, %29 : vector<16x16xf32>
    %cst_15 = arith.constant 9.99999974E-6 : f32
    %31 = vector.broadcast %cst_15 : f32 to vector<16x1xf32>
    %32 = arith.addf %28, %31 : vector<16x1xf32>
    %33 = math.rsqrt %32 : vector<16x1xf32>
    %34 = vector.broadcast %33 : vector<16x1xf32> to vector<16x16xf32>
    %35 = arith.mulf %30, %34 : vector<16x16xf32>
    %36 = vector.broadcast %14 : vector<1x16xf32> to vector<16x16xf32>
    %37 = arith.mulf %35, %36 : vector<16x16xf32>
    %38 = vector.broadcast %15 : vector<1x16xf32> to vector<16x16xf32>
    %39 = arith.addf %37, %38 : vector<16x16xf32>
    %c64 = arith.constant 64 : index
    %c0_16 = arith.constant 0 : index
    %40 = vector.load %arg1[%c64, %c0_16] : memref<216x128xf32, #tpu.memory_space<vmem>>, vector<16x64xf32>
    %cst_17 = arith.constant dense<0.000000e+00> : vector<16x64xf32>
    %41 = tpu.matmul %39, %40, %cst_17 {dimension_numbers = #tpu.dot_dimension_numbers<[1], [0], [0], [1], [0, 0, 1, 1], [], []>} : vector<16x16xf32>, vector<16x64xf32>, vector<16x64xf32> -> vector<16x64xf32>
    %c24 = arith.constant 24 : index
    %c0_18 = arith.constant 0 : index
    %42 = vector.load %arg2[%c24, %c0_18] : memref<128x128xf32, #tpu.memory_space<vmem>>, vector<1x64xf32>
    %43 = vector.broadcast %42 : vector<1x64xf32> to vector<16x64xf32>
    %44 = arith.addf %41, %43 : vector<16x64xf32>
    %cst_19 = arith.constant 5.000000e-01 : f32
    %45 = vector.broadcast %cst_19 : f32 to vector<16x64xf32>
    %46 = arith.mulf %45, %44 : vector<16x64xf32>
    %cst_20 = arith.constant 0.707106769 : f32
    %47 = vector.broadcast %cst_20 : f32 to vector<16x64xf32>
    %48 = arith.mulf %44, %47 : vector<16x64xf32>
    %49 = math.erf %48 : vector<16x64xf32>
    %cst_21 = arith.constant 1.000000e+00 : f32
    %50 = vector.broadcast %cst_21 : f32 to vector<16x64xf32>
    %51 = arith.addf %50, %49 : vector<16x64xf32>
    %52 = arith.mulf %46, %51 : vector<16x64xf32>
    %c32 = arith.constant 32 : index
    %c0_22 = arith.constant 0 : index
    %53 = vector.load %arg2[%c32, %c0_22] : memref<128x128xf32, #tpu.memory_space<vmem>>, vector<1x64xf32>
    %c40 = arith.constant 40 : index
    %c0_23 = arith.constant 0 : index
    %54 = vector.load %arg2[%c40, %c0_23] : memref<128x128xf32, #tpu.memory_space<vmem>>, vector<1x64xf32>
    %cst_24 = arith.constant dense<0.000000e+00> : vector<16xf32>
    %55 = vector.multi_reduction <add>, %52, %cst_24 [1] : vector<16x64xf32> to vector<16xf32>
    %56 = vector.shape_cast %55 : vector<16xf32> to vector<16x1xf32>
    %57 = arith.mulf %52, %52 : vector<16x64xf32>
    %cst_25 = arith.constant dense<0.000000e+00> : vector<16xf32>
    %58 = vector.multi_reduction <add>, %57, %cst_25 [1] : vector<16x64xf32> to vector<16xf32>
    %59 = vector.shape_cast %58 : vector<16xf32> to vector<16x1xf32>
    %cst_26 = arith.constant 1.562500e-02 : f32
    %60 = vector.broadcast %cst_26 : f32 to vector<16x1xf32>
    %61 = arith.mulf %56, %60 : vector<16x1xf32>
    %cst_27 = arith.constant 1.562500e-02 : f32
    %62 = vector.broadcast %cst_27 : f32 to vector<16x1xf32>
    %63 = arith.mulf %59, %62 : vector<16x1xf32>
    %64 = arith.mulf %61, %61 : vector<16x1xf32>
    %65 = arith.subf %63, %64 : vector<16x1xf32>
    %cst_28 = arith.constant 0.000000e+00 : f32
    %66 = vector.broadcast %cst_28 : f32 to vector<16x1xf32>
    %67 = arith.maximumf %65, %66 : vector<16x1xf32>
    %68 = vector.broadcast %61 : vector<16x1xf32> to vector<16x64xf32>
    %69 = arith.subf %52, %68 : vector<16x64xf32>
    %cst_29 = arith.constant 9.99999974E-6 : f32
    %70 = vector.broadcast %cst_29 : f32 to vector<16x1xf32>
    %71 = arith.addf %67, %70 : vector<16x1xf32>
    %72 = math.rsqrt %71 : vector<16x1xf32>
    %73 = vector.broadcast %72 : vector<16x1xf32> to vector<16x64xf32>
    %74 = arith.mulf %69, %73 : vector<16x64xf32>
    %75 = vector.broadcast %53 : vector<1x64xf32> to vector<16x64xf32>
    %76 = arith.mulf %74, %75 : vector<16x64xf32>
    %77 = vector.broadcast %54 : vector<1x64xf32> to vector<16x64xf32>
    %78 = arith.addf %76, %77 : vector<16x64xf32>
    %79 = arith.addf %0, %78 : vector<16x64xf32>
    %c80 = arith.constant 80 : index
    %c0_30 = arith.constant 0 : index
    %80 = vector.load %arg1[%c80, %c0_30] : memref<216x128xf32, #tpu.memory_space<vmem>>, vector<64x31xf32>
    %cst_31 = arith.constant dense<0.000000e+00> : vector<16x31xf32>
    %81 = tpu.matmul %79, %80, %cst_31 {dimension_numbers = #tpu.dot_dimension_numbers<[1], [0], [0], [1], [0, 0, 1, 1], [], []>} : vector<16x64xf32>, vector<64x31xf32>, vector<16x31xf32> -> vector<16x31xf32>
    %c48 = arith.constant 48 : index
    %c0_32 = arith.constant 0 : index
    %82 = vector.load %arg2[%c48, %c0_32] : memref<128x128xf32, #tpu.memory_space<vmem>>, vector<1x31xf32>
    %83 = vector.broadcast %82 : vector<1x31xf32> to vector<16x31xf32>
    %84 = arith.addf %81, %83 : vector<16x31xf32>
    %c56 = arith.constant 56 : index
    %c0_33 = arith.constant 0 : index
    %85 = vector.load %arg2[%c56, %c0_33] : memref<128x128xf32, #tpu.memory_space<vmem>>, vector<1x31xf32>
    %c64_34 = arith.constant 64 : index
    %c0_35 = arith.constant 0 : index
    %86 = vector.load %arg2[%c64_34, %c0_35] : memref<128x128xf32, #tpu.memory_space<vmem>>, vector<1x31xf32>
    %cst_36 = arith.constant dense<0.000000e+00> : vector<16xf32>
    %87 = vector.multi_reduction <add>, %84, %cst_36 [1] : vector<16x31xf32> to vector<16xf32>
    %88 = vector.shape_cast %87 : vector<16xf32> to vector<16x1xf32>
    %89 = arith.mulf %84, %84 : vector<16x31xf32>
    %cst_37 = arith.constant dense<0.000000e+00> : vector<16xf32>
    %90 = vector.multi_reduction <add>, %89, %cst_37 [1] : vector<16x31xf32> to vector<16xf32>
    %91 = vector.shape_cast %90 : vector<16xf32> to vector<16x1xf32>
    %cst_38 = arith.constant 0.0322580636 : f32
    %92 = vector.broadcast %cst_38 : f32 to vector<16x1xf32>
    %93 = arith.mulf %88, %92 : vector<16x1xf32>
    %cst_39 = arith.constant 0.0322580636 : f32
    %94 = vector.broadcast %cst_39 : f32 to vector<16x1xf32>
    %95 = arith.mulf %91, %94 : vector<16x1xf32>
    %96 = arith.mulf %93, %93 : vector<16x1xf32>
    %97 = arith.subf %95, %96 : vector<16x1xf32>
    %cst_40 = arith.constant 0.000000e+00 : f32
    %98 = vector.broadcast %cst_40 : f32 to vector<16x1xf32>
    %99 = arith.maximumf %97, %98 : vector<16x1xf32>
    %100 = vector.broadcast %93 : vector<16x1xf32> to vector<16x31xf32>
    %101 = arith.subf %84, %100 : vector<16x31xf32>
    %cst_41 = arith.constant 9.99999974E-6 : f32
    %102 = vector.broadcast %cst_41 : f32 to vector<16x1xf32>
    %103 = arith.addf %99, %102 : vector<16x1xf32>
    %104 = math.rsqrt %103 : vector<16x1xf32>
    %105 = vector.broadcast %104 : vector<16x1xf32> to vector<16x31xf32>
    %106 = arith.mulf %101, %105 : vector<16x31xf32>
    %107 = vector.broadcast %85 : vector<1x31xf32> to vector<16x31xf32>
    %108 = arith.mulf %106, %107 : vector<16x31xf32>
    %109 = vector.broadcast %86 : vector<1x31xf32> to vector<16x31xf32>
    %110 = arith.addf %108, %109 : vector<16x31xf32>
    %c144 = arith.constant 144 : index
    %c0_42 = arith.constant 0 : index
    %111 = vector.load %arg1[%c144, %c0_42] : memref<216x128xf32, #tpu.memory_space<vmem>>, vector<31x7xf32>
    %cst_43 = arith.constant dense<0.000000e+00> : vector<16x7xf32>
    %112 = tpu.matmul %110, %111, %cst_43 {dimension_numbers = #tpu.dot_dimension_numbers<[1], [0], [0], [1], [0, 0, 1, 1], [], []>} : vector<16x31xf32>, vector<31x7xf32>, vector<16x7xf32> -> vector<16x7xf32>
    %c72 = arith.constant 72 : index
    %c0_44 = arith.constant 0 : index
    %113 = vector.load %arg2[%c72, %c0_44] : memref<128x128xf32, #tpu.memory_space<vmem>>, vector<1x7xf32>
    %114 = vector.broadcast %113 : vector<1x7xf32> to vector<16x7xf32>
    %115 = arith.addf %112, %114 : vector<16x7xf32>
    %cst_45 = arith.constant 5.000000e-01 : f32
    %116 = vector.broadcast %cst_45 : f32 to vector<16x7xf32>
    %117 = arith.mulf %116, %115 : vector<16x7xf32>
    %cst_46 = arith.constant 0.707106769 : f32
    %118 = vector.broadcast %cst_46 : f32 to vector<16x7xf32>
    %119 = arith.mulf %115, %118 : vector<16x7xf32>
    %120 = math.erf %119 : vector<16x7xf32>
    %cst_47 = arith.constant 1.000000e+00 : f32
    %121 = vector.broadcast %cst_47 : f32 to vector<16x7xf32>
    %122 = arith.addf %121, %120 : vector<16x7xf32>
    %123 = arith.mulf %117, %122 : vector<16x7xf32>
    %c80_48 = arith.constant 80 : index
    %c0_49 = arith.constant 0 : index
    %124 = vector.load %arg2[%c80_48, %c0_49] : memref<128x128xf32, #tpu.memory_space<vmem>>, vector<1x7xf32>
    %c88 = arith.constant 88 : index
    %c0_50 = arith.constant 0 : index
    %125 = vector.load %arg2[%c88, %c0_50] : memref<128x128xf32, #tpu.memory_space<vmem>>, vector<1x7xf32>
    %cst_51 = arith.constant dense<0.000000e+00> : vector<16xf32>
    %126 = vector.multi_reduction <add>, %123, %cst_51 [1] : vector<16x7xf32> to vector<16xf32>
    %127 = vector.shape_cast %126 : vector<16xf32> to vector<16x1xf32>
    %128 = arith.mulf %123, %123 : vector<16x7xf32>
    %cst_52 = arith.constant dense<0.000000e+00> : vector<16xf32>
    %129 = vector.multi_reduction <add>, %128, %cst_52 [1] : vector<16x7xf32> to vector<16xf32>
    %130 = vector.shape_cast %129 : vector<16xf32> to vector<16x1xf32>
    %cst_53 = arith.constant 0.142857149 : f32
    %131 = vector.broadcast %cst_53 : f32 to vector<16x1xf32>
    %132 = arith.mulf %127, %131 : vector<16x1xf32>
    %cst_54 = arith.constant 0.142857149 : f32
    %133 = vector.broadcast %cst_54 : f32 to vector<16x1xf32>
    %134 = arith.mulf %130, %133 : vector<16x1xf32>
    %135 = arith.mulf %132, %132 : vector<16x1xf32>
    %136 = arith.subf %134, %135 : vector<16x1xf32>
    %cst_55 = arith.constant 0.000000e+00 : f32
    %137 = vector.broadcast %cst_55 : f32 to vector<16x1xf32>
    %138 = arith.maximumf %136, %137 : vector<16x1xf32>
    %139 = vector.broadcast %132 : vector<16x1xf32> to vector<16x7xf32>
    %140 = arith.subf %123, %139 : vector<16x7xf32>
    %cst_56 = arith.constant 9.99999974E-6 : f32
    %141 = vector.broadcast %cst_56 : f32 to vector<16x1xf32>
    %142 = arith.addf %138, %141 : vector<16x1xf32>
    %143 = math.rsqrt %142 : vector<16x1xf32>
    %144 = vector.broadcast %143 : vector<16x1xf32> to vector<16x7xf32>
    %145 = arith.mulf %140, %144 : vector<16x7xf32>
    %146 = vector.broadcast %124 : vector<1x7xf32> to vector<16x7xf32>
    %147 = arith.mulf %145, %146 : vector<16x7xf32>
    %148 = vector.broadcast %125 : vector<1x7xf32> to vector<16x7xf32>
    %149 = arith.addf %147, %148 : vector<16x7xf32>
    %c176 = arith.constant 176 : index
    %c0_57 = arith.constant 0 : index
    %150 = vector.load %arg1[%c176, %c0_57] : memref<216x128xf32, #tpu.memory_space<vmem>>, vector<7x31xf32>
    %cst_58 = arith.constant dense<0.000000e+00> : vector<16x31xf32>
    %151 = tpu.matmul %149, %150, %cst_58 {dimension_numbers = #tpu.dot_dimension_numbers<[1], [0], [0], [1], [0, 0, 1, 1], [], []>} : vector<16x7xf32>, vector<7x31xf32>, vector<16x31xf32> -> vector<16x31xf32>
    %c96 = arith.constant 96 : index
    %c0_59 = arith.constant 0 : index
    %152 = vector.load %arg2[%c96, %c0_59] : memref<128x128xf32, #tpu.memory_space<vmem>>, vector<1x31xf32>
    %153 = vector.broadcast %152 : vector<1x31xf32> to vector<16x31xf32>
    %154 = arith.addf %151, %153 : vector<16x31xf32>
    %cst_60 = arith.constant 5.000000e-01 : f32
    %155 = vector.broadcast %cst_60 : f32 to vector<16x31xf32>
    %156 = arith.mulf %155, %154 : vector<16x31xf32>
    %cst_61 = arith.constant 0.707106769 : f32
    %157 = vector.broadcast %cst_61 : f32 to vector<16x31xf32>
    %158 = arith.mulf %154, %157 : vector<16x31xf32>
    %159 = math.erf %158 : vector<16x31xf32>
    %cst_62 = arith.constant 1.000000e+00 : f32
    %160 = vector.broadcast %cst_62 : f32 to vector<16x31xf32>
    %161 = arith.addf %160, %159 : vector<16x31xf32>
    %162 = arith.mulf %156, %161 : vector<16x31xf32>
    %c104 = arith.constant 104 : index
    %c0_63 = arith.constant 0 : index
    %163 = vector.load %arg2[%c104, %c0_63] : memref<128x128xf32, #tpu.memory_space<vmem>>, vector<1x31xf32>
    %c112 = arith.constant 112 : index
    %c0_64 = arith.constant 0 : index
    %164 = vector.load %arg2[%c112, %c0_64] : memref<128x128xf32, #tpu.memory_space<vmem>>, vector<1x31xf32>
    %cst_65 = arith.constant dense<0.000000e+00> : vector<16xf32>
    %165 = vector.multi_reduction <add>, %162, %cst_65 [1] : vector<16x31xf32> to vector<16xf32>
    %166 = vector.shape_cast %165 : vector<16xf32> to vector<16x1xf32>
    %167 = arith.mulf %162, %162 : vector<16x31xf32>
    %cst_66 = arith.constant dense<0.000000e+00> : vector<16xf32>
    %168 = vector.multi_reduction <add>, %167, %cst_66 [1] : vector<16x31xf32> to vector<16xf32>
    %169 = vector.shape_cast %168 : vector<16xf32> to vector<16x1xf32>
    %cst_67 = arith.constant 0.0322580636 : f32
    %170 = vector.broadcast %cst_67 : f32 to vector<16x1xf32>
    %171 = arith.mulf %166, %170 : vector<16x1xf32>
    %cst_68 = arith.constant 0.0322580636 : f32
    %172 = vector.broadcast %cst_68 : f32 to vector<16x1xf32>
    %173 = arith.mulf %169, %172 : vector<16x1xf32>
    %174 = arith.mulf %171, %171 : vector<16x1xf32>
    %175 = arith.subf %173, %174 : vector<16x1xf32>
    %cst_69 = arith.constant 0.000000e+00 : f32
    %176 = vector.broadcast %cst_69 : f32 to vector<16x1xf32>
    %177 = arith.maximumf %175, %176 : vector<16x1xf32>
    %178 = vector.broadcast %171 : vector<16x1xf32> to vector<16x31xf32>
    %179 = arith.subf %162, %178 : vector<16x31xf32>
    %cst_70 = arith.constant 9.99999974E-6 : f32
    %180 = vector.broadcast %cst_70 : f32 to vector<16x1xf32>
    %181 = arith.addf %177, %180 : vector<16x1xf32>
    %182 = math.rsqrt %181 : vector<16x1xf32>
    %183 = vector.broadcast %182 : vector<16x1xf32> to vector<16x31xf32>
    %184 = arith.mulf %179, %183 : vector<16x31xf32>
    %185 = vector.broadcast %163 : vector<1x31xf32> to vector<16x31xf32>
    %186 = arith.mulf %184, %185 : vector<16x31xf32>
    %187 = vector.broadcast %164 : vector<1x31xf32> to vector<16x31xf32>
    %188 = arith.addf %186, %187 : vector<16x31xf32>
    %189 = arith.addf %110, %188 : vector<16x31xf32>
    %c184 = arith.constant 184 : index
    %c0_71 = arith.constant 0 : index
    %190 = vector.load %arg1[%c184, %c0_71] : memref<216x128xf32, #tpu.memory_space<vmem>>, vector<31x128xf32>
    %cst_72 = arith.constant dense<0.000000e+00> : vector<16x128xf32>
    %191 = tpu.matmul %189, %190, %cst_72 {dimension_numbers = #tpu.dot_dimension_numbers<[1], [0], [0], [1], [0, 0, 1, 1], [], []>} : vector<16x31xf32>, vector<31x128xf32>, vector<16x128xf32> -> vector<16x128xf32>
    %c120 = arith.constant 120 : index
    %c0_73 = arith.constant 0 : index
    %192 = vector.load %arg2[%c120, %c0_73] : memref<128x128xf32, #tpu.memory_space<vmem>>, vector<1x128xf32>
    %193 = vector.broadcast %192 : vector<1x128xf32> to vector<16x128xf32>
    %194 = arith.addf %191, %193 : vector<16x128xf32>
    %c0_74 = arith.constant 0 : index
    %c0_75 = arith.constant 0 : index
    %195 = vector.load %arg3[%c0_74, %c0_75] : memref<16x128xf32, #tpu.memory_space<vmem>>, vector<16x128xf32>
    tpu.vector_store %arg3[%c0_74, %c0_75], %194 {strides = array<i32>} : memref<16x128xf32, #tpu.memory_space<vmem>>, vector<16x128xf32>,
    return
  }
}

</mosaic_0001>

<llo_original>
// kernel: tpu_custom_call.1
$region0: #{tpu_custom_call.1}
  #allocation0 [shape = 'u32[]', space=smem, size = 0x4, offset = 0x4, fixed_abs, tag = 'smem constant byte address 0x4 - core index']
  #allocation1 [shape = 'u32[144,128]{1,0:T(1,128)}', space=vmem, size = 0x12000, scoped, tag = 'internal scratch']
  %s0 = inlined_call_operand.hbm [shape: f32[16,64], index: 0, kind: input, shape index: {}]
  %s1 = inlined_call_operand.hbm [shape: f32[216,128], index: 1, kind: input, shape index: {}]
  %s2 = inlined_call_operand.hbm [shape: f32[128,128], index: 2, kind: input, shape index: {}]
  %s3 = inlined_call_operand.hbm [shape: f32[16,128], index: 3, kind: output, shape index: {}]
  %s4 = sld [smem:[#allocation0]]
  $region34: #{tpu_custom_call.1} parent=0
    _
  %s6 = ssub.s32 1, %s4
  %s7 = scalar_select 0, %s6, %s4
  $region1: #{tpu_custom_call.1} parent=0
    #allocation2 [shape = 'u8[8192]{0}', space=vmem, size = 0x2000, scoped, tag = 'input window, operand 0, single buffered']
    #allocation3 [shape = 's32[1]{0}', space=sflag, size = 0x4, scoped, tag = 'scoped memory for tpu_custom_call.1']
    #allocation4 [shape = 's32[1]{0}', space=sflag, size = 0x4, scoped, tag = 'scoped memory for tpu_custom_call.1']
    #allocation5 [shape = 'u8[110592]{0}', space=vmem, size = 0x1b000, scoped, tag = 'input window, operand 1, single buffered']
    #allocation6 [shape = 's32[1]{0}', space=sflag, size = 0x4, scoped, tag = 'scoped memory for tpu_custom_call.1']
    #allocation7 [shape = 'u8[65536]{0}', space=vmem, size = 0x10000, scoped, tag = 'input window, operand 2, single buffered']
    #allocation8 [shape = 'u8[8192]{0}', space=vmem, size = 0x2000, scoped, tag = 'output window, operand 0, single buffered']
    %8 = vsyncpa [#allocation3], 0
    %9 = vsyncpa [#allocation6], 0
    %10 = vsyncpa [#allocation4], 0
    // Predicated region
    $region2: #{tpu_custom_call.1} parent=1 // pred_check
      _
    $region3: #{tpu_custom_call.1} parent=1 // pred_check_branch
      %12 = sbr.rel (0) target = $region5
    $region4: #{tpu_custom_call.1} parent=1 // pred_region
      %s14 = ssub.s32 256, 256
      %15 = vsyncadd [#allocation3], %s14
      %s16 = sshll.u32 [#allocation2], 4
      %s17 = int_to_ptr.vmem [resolvable:$true] %s16
      %22 = dma.hbm_to_vmem [thread:$0]  %s0, 256, %s17, [#allocation3], 128, 128, 8
    $region5: #{tpu_custom_call.1} parent=1 // pred_fallthru
      _
    // Predicated region
    $region6: #{tpu_custom_call.1} parent=1 // pred_check
      _
    $region7: #{tpu_custom_call.1} parent=1 // pred_check_branch
      %24 = sbr.rel (0) target = $region9
    $region8: #{tpu_custom_call.1} parent=1 // pred_region
      %s26 = ssub.s32 3456, 3456
      %27 = vsyncadd [#allocation6], %s26
      %s28 = sshll.u32 [#allocation5], 4
      %s29 = int_to_ptr.vmem [resolvable:$true] %s28
      %34 = dma.hbm_to_vmem [thread:$0]  %s1, 3456, %s29, [#allocation6], 128, 128, 8
    $region9: #{tpu_custom_call.1} parent=1 // pred_fallthru
      _
    // Predicated region
    $region10: #{tpu_custom_call.1} parent=1 // pred_check
      _
    $region11: #{tpu_custom_call.1} parent=1 // pred_check_branch
      %36 = sbr.rel (0) target = $region13
    $region12: #{tpu_custom_call.1} parent=1 // pred_region
      %s38 = ssub.s32 2048, 2048
      %39 = vsyncadd [#allocation6], %s38
      %s40 = sshll.u32 [#allocation7], 4
      %s41 = int_to_ptr.vmem [resolvable:$true] %s40
      %46 = dma.hbm_to_vmem [thread:$0]  %s2, 2048, %s41, [#allocation6], 128, 128, 8
    $region13: #{tpu_custom_call.1} parent=1 // pred_fallthru
      _
    // Predicated region
    $region14: #{tpu_custom_call.1} parent=1 // pred_check
      _
    $region15: #{tpu_custom_call.1} parent=1 // pred_check_branch
      %48 = sbr.rel (0) target = $region17
    $region16: #{tpu_custom_call.1} parent=1 // pred_region
      %49 = dma.done [#allocation3], 256
    $region17: #{tpu_custom_call.1} parent=1 // pred_fallthru
      _
    // Predicated region
    $region18: #{tpu_custom_call.1} parent=1 // pred_check
      _
    $region19: #{tpu_custom_call.1} parent=1 // pred_check_branch
      %51 = sbr.rel (0) target = $region21
    $region20: #{tpu_custom_call.1} parent=1 // pred_region
      %52 = dma.done [#allocation6], 3456
    $region21: #{tpu_custom_call.1} parent=1 // pred_fallthru
      _
    // Predicated region
    $region22: #{tpu_custom_call.1} parent=1 // pred_check
      _
    $region23: #{tpu_custom_call.1} parent=1 // pred_check_branch
      %54 = sbr.rel (0) target = $region25
    $region24: #{tpu_custom_call.1} parent=1 // pred_region
      %55 = dma.done [#allocation6], 2048
    $region25: #{tpu_custom_call.1} parent=1 // pred_fallthru
      _
    %v56 = vld [vmem:[#allocation2] sm:$0xff]
    %v57 = vld [vmem:[#allocation2 + $0x8] sm:$0xff]
    %v58 = vld [vmem:[#allocation5] sm:$0xff]
    %v59 = vld [vmem:[#allocation5 + $0x8] sm:$0xff]
    %v60 = vld [vmem:[#allocation5 + $0x10] sm:$0xff]
    %v61 = vld [vmem:[#allocation5 + $0x18] sm:$0xff]
    %v62 = vld [vmem:[#allocation5 + $0x20] sm:$0xff]
    %v63 = vld [vmem:[#allocation5 + $0x28] sm:$0xff]
    %v64 = vld [vmem:[#allocation5 + $0x30] sm:$0xff]
    %v65 = vld [vmem:[#allocation5 + $0x38] sm:$0xff]
    %v66 = vld [vmem:[#allocation7] sm:$0x1]
    %v67 = vlaneseq
    %v68 = vshrl.u32 %v67, 7
    %v69 = vsub.s32 0, %v68
    %v70 = vrot.slane %v66, %v69
    %vm71 = vcmask 523264
    %v73 = vsel %vm71, %v56, 0
    %v76 = vsel %vm71, %v57, 0
    %78 = vmatprep.subr.mxu0 0.0
    %79 = vmatpush1.msra.mxu0 %v58
    %80 = vmatprep.subr.mxu0 0.0
    %81 = vmatpush1.msra.mxu0 %v59
    %82 = vmatprep.subr.mxu0 0.0
    %83 = vmatpush1.msra.mxu0 %v60
    %84 = vmatprep.subr.mxu0 0.0
    %85 = vmatpush1.msra.mxu0 %v61
    %86 = vmatprep.subr.mxu0 0.0
    %87 = vmatpush1.msra.mxu0 %v62
    %88 = vmatprep.subr.mxu0 0.0
    %89 = vmatpush1.msra.mxu0 %v63
    %90 = vmatprep.subr.mxu0 0.0
    %91 = vmatpush1.msra.mxu0 %v64
    %92 = vmatprep.subr.mxu0 0.0
    %93 = vmatpush1.msra.mxu0 %v65
    %94 = vmatprep.subr.mxu0 0.0
    %95 = vmatpush1.msra.mxu0 0.0
    %96 = vmatprep.subr.mxu0 0.0
    %97 = vmatpush1.msra.mxu0 0.0
    %98 = vmatprep.subr.mxu0 0.0
    %99 = vmatpush1.msra.mxu0 0.0
    %100 = vmatprep.subr.mxu0 0.0
    %101 = vmatpush1.msra.mxu0 0.0
    %102 = vmatprep.subr.mxu0 0.0
    %103 = vmatpush1.msra.mxu0 0.0
    %104 = vmatprep.subr.mxu0 0.0
    %105 = vmatpush1.msra.mxu0 0.0
    %106 = vmatprep.subr.mxu0 0.0
    %107 = vmatpush1.msra.mxu0 0.0
    %108 = vmatprep.subr.mxu0 0.0
    %109 = vmatpush1.msra.mxu0 0.0
    %110 = vmatprep.subr.mxu0 0.0
    %111 = vmatpush1.msra.mxu0 0.0
    %112 = vmatprep.subr.mxu0 0.0
    %113 = vmatpush1.msra.mxu0 0.0
    %114 = vmatprep.subr.mxu0 0.0
    %115 = vmatpush1.msra.mxu0 0.0
    %116 = vmatprep.subr.mxu0 0.0
    %117 = vmatpush1.msra.mxu0 0.0
    %118 = vmatprep.subr.mxu0 0.0
    %119 = vmatpush1.msra.mxu0 0.0
    %120 = vmatprep.subr.mxu0 0.0
    %121 = vmatpush1.msra.mxu0 0.0
    %122 = vmatprep.subr.mxu0 0.0
    %123 = vmatpush1.msra.mxu0 0.0
    %124 = vmatprep.subr.mxu0 0.0
    %125 = vmatpush1.msra.mxu0 0.0
    %126 = vmatprep.subr.mxu0 0.0
    %127 = vmatpush1.msra.mxu0 0.0
    %128 = vmatprep.subr.mxu0 0.0
    %129 = vmatpush1.msra.mxu0 0.0
    %130 = vmatprep.subr.mxu0 0.0
    %131 = vmatpush1.msra.mxu0 0.0
    %132 = vmatprep.subr.mxu0 0.0
    %133 = vmatpush1.msra.mxu0 0.0
    %134 = vmatprep.subr.mxu0 0.0
    %135 = vmatpush1.msra.mxu0 0.0
    %136 = vmatprep.subr.mxu0 0.0
    %137 = vmatpush1.msra.mxu0 0.0
    %138 = vmatprep.subr.mxu0 0.0
    %139 = vmatpush1.msra.mxu0 0.0
    %140 = vmatprep.subr.mxu0 0.0
    %141 = vmatpush1.msra.mxu0 0.0
    %142 = vmatprep.mubr.f32.mxu0 0.0
    %143 = vmatmul.mubr.f32.gmra.mrb[0].mxu0 %v73
    %v144 = vpop.f32.mrb[0].mxu0
    %v145 = vadd.f32 %v70, %v144
    %v146 = vpop.f32.mrb[0].mxu0
    %147 = vmatprep.mubr.f32.mxu0 0.0
    %148 = vmatmul.mubr.f32.gmra.mrb[0].mxu0 %v76
    %v149 = vpop.f32.mrb[0].mxu0
    %v150 = vadd.f32 %v70, %v149
    %v151 = vpop.f32.mrb[0].mxu0
    %152 = vdwg.mxu0
    %v153 = vmul.f32 %v145, 0.5
    %v154 = vmul.f32 %v150, 0.5
    %v155 = vmul.f32 %v145, 0.70710677
    %v156 = vmul.f32 %v150, 0.70710677
    %v157 = verf.f32.pop %v155
    %v158 = verf.f32.pop %v156
    %v159 = vadd.f32 %v157, 1.0
    %v160 = vadd.f32 %v158, 1.0
    %v161 = vmul.f32 %v153, %v159
    %v162 = vmul.f32 %v154, %v160
    %v163 = vld [vmem:[#allocation7 + $0x8] sm:$0x1]
    %v164 = vld [vmem:[#allocation7 + $0x10] sm:$0x1]
    %vm165 = vcmask 130048
    %v166 = vsel %vm165, %v161, 0.0
    %167 = vadd.xlane.f32.xlu0 %v166
    %v168 = vpop.xlane.xlu0 %167
    %v169 = vsel %vm165, %v162, 0.0
    %170 = vadd.xlane.f32.xlu0 %v169
    %v171 = vpop.xlane.xlu0 %170
    %v172 = vmul.f32 %v161, %v161
    %v173 = vmul.f32 %v162, %v162
    %v174 = vsel %vm165, %v172, 0.0
    %175 = vadd.xlane.f32.xlu0 %v174
    %v176 = vpop.xlane.xlu0 %175
    %v177 = vsel %vm165, %v173, 0.0
    %178 = vadd.xlane.f32.xlu0 %v177
    %v179 = vpop.xlane.xlu0 %178
    %v180 = vmul.f32 %v168, 0.0625
    %v181 = vmul.f32 %v171, 0.0625
    %v182 = vmul.f32 %v176, 0.0625
    %v183 = vmul.f32 %v179, 0.0625
    %v184 = vmul.f32 %v180, %v180
    %v185 = vmul.f32 %v181, %v181
    %v186 = vsub.f32 %v182, %v184
    %v187 = vsub.f32 %v183, %v185
    %v188 = vmax.f32 %v186, 0.0
    %v189 = vmax.f32 %v187, 0.0
    %v190 = vsub.f32 %v161, %v180
    %v191 = vsub.f32 %v162, %v181
    %v192 = vadd.f32 %v188, 1e-05
    %v193 = vadd.f32 %v189, 1e-05
    %v194 = vrsqrt.pop %v192
    %v195 = vrsqrt.pop %v193
    %v196 = vmul.f32 %v190, %v194
    %v197 = vmul.f32 %v191, %v195
    %v198 = vlaneseq
    %v199 = vshrl.u32 %v198, 7
    %v200 = vsub.s32 0, %v199
    %v201 = vrot.slane %v163, %v200
    %v202 = vmul.f32 %v196, %v201
    %v203 = vmul.f32 %v197, %v201
    %v204 = vlaneseq
    %v205 = vshrl.u32 %v204, 7
    %v206 = vsub.s32 0, %v205
    %v207 = vrot.slane %v164, %v206
    %v208 = vadd.f32 %v202, %v207
    %v209 = vadd.f32 %v203, %v207
    %v210 = vld [vmem:[#allocation5 + $0x40] sm:$0xff]
    %v211 = vld [vmem:[#allocation5 + $0x48] sm:$0xff]
    %v212 = vld [vmem:[#allocation7 + $0x18] sm:$0x1]
    %v213 = vlaneseq
    %v214 = vshrl.u32 %v213, 7
    %v215 = vsub.s32 0, %v214
    %v216 = vrot.slane %v212, %v215
    %v218 = vsel %vm165, %v208, 0
    %v221 = vsel %vm165, %v209, 0
    %223 = vmatprep.subr.mxu0 0.0
    %224 = vmatpush1.msra.mxu0 %v210
    %225 = vmatprep.subr.mxu0 0.0
    %226 = vmatpush1.msra.mxu0 %v211
    %227 = vmatprep.subr.mxu0 0.0
    %228 = vmatpush1.msra.mxu0 0.0
    %229 = vmatprep.subr.mxu0 0.0
    %230 = vmatpush1.msra.mxu0 0.0
    %231 = vmatprep.subr.mxu0 0.0
    %232 = vmatpush1.msra.mxu0 0.0
    %233 = vmatprep.subr.mxu0 0.0
    %234 = vmatpush1.msra.mxu0 0.0
    %235 = vmatprep.subr.mxu0 0.0
    %236 = vmatpush1.msra.mxu0 0.0
    %237 = vmatprep.subr.mxu0 0.0
    %238 = vmatpush1.msra.mxu0 0.0
    %239 = vmatprep.subr.mxu0 0.0
    %240 = vmatpush1.msra.mxu0 0.0
    %241 = vmatprep.subr.mxu0 0.0
    %242 = vmatpush1.msra.mxu0 0.0
    %243 = vmatprep.subr.mxu0 0.0
    %244 = vmatpush1.msra.mxu0 0.0
    %245 = vmatprep.subr.mxu0 0.0
    %246 = vmatpush1.msra.mxu0 0.0
    %247 = vmatprep.subr.mxu0 0.0
    %248 = vmatpush1.msra.mxu0 0.0
    %249 = vmatprep.subr.mxu0 0.0
    %250 = vmatpush1.msra.mxu0 0.0
    %251 = vmatprep.subr.mxu0 0.0
    %252 = vmatpush1.msra.mxu0 0.0
    %253 = vmatprep.subr.mxu0 0.0
    %254 = vmatpush1.msra.mxu0 0.0
    %255 = vmatprep.subr.mxu0 0.0
    %256 = vmatpush1.msra.mxu0 0.0
    %257 = vmatprep.subr.mxu0 0.0
    %258 = vmatpush1.msra.mxu0 0.0
    %259 = vmatprep.subr.mxu0 0.0
    %260 = vmatpush1.msra.mxu0 0.0
    %261 = vmatprep.subr.mxu0 0.0
    %262 = vmatpush1.msra.mxu0 0.0
    %263 = vmatprep.subr.mxu0 0.0
    %264 = vmatpush1.msra.mxu0 0.0
    %265 = vmatprep.subr.mxu0 0.0
    %266 = vmatpush1.msra.mxu0 0.0
    %267 = vmatprep.subr.mxu0 0.0
    %268 = vmatpush1.msra.mxu0 0.0
    %269 = vmatprep.subr.mxu0 0.0
    %270 = vmatpush1.msra.mxu0 0.0
    %271 = vmatprep.subr.mxu0 0.0
    %272 = vmatpush1.msra.mxu0 0.0
    %273 = vmatprep.subr.mxu0 0.0
    %274 = vmatpush1.msra.mxu0 0.0
    %275 = vmatprep.subr.mxu0 0.0
    %276 = vmatpush1.msra.mxu0 0.0
    %277 = vmatprep.subr.mxu0 0.0
    %278 = vmatpush1.msra.mxu0 0.0
    %279 = vmatprep.subr.mxu0 0.0
    %280 = vmatpush1.msra.mxu0 0.0
    %281 = vmatprep.subr.mxu0 0.0
    %282 = vmatpush1.msra.mxu0 0.0
    %283 = vmatprep.subr.mxu0 0.0
    %284 = vmatpush1.msra.mxu0 0.0
    %285 = vmatprep.subr.mxu0 0.0
    %286 = vmatpush1.msra.mxu0 0.0
    %287 = vmatprep.mubr.f32.mxu0 0.0
    %288 = vmatmul.mubr.f32.gmra.mrb[0].mxu0 %v218
    %v289 = vpop.f32.mrb[0].mxu0
    %v290 = vadd.f32 %v216, %v289
    %v291 = vpop.f32.mrb[0].mxu0
    %292 = vmatprep.mubr.f32.mxu0 0.0
    %293 = vmatmul.mubr.f32.gmra.mrb[0].mxu0 %v221
    %v294 = vpop.f32.mrb[0].mxu0
    %v295 = vadd.f32 %v216, %v294
    %v296 = vpop.f32.mrb[0].mxu0
    %297 = vdwg.mxu0
    %v298 = vmul.f32 %v290, 0.5
    %v299 = vmul.f32 %v295, 0.5
    %v300 = vmul.f32 %v290, 0.70710677
    %v301 = vmul.f32 %v295, 0.70710677
    %v302 = verf.f32.pop %v300
    %v303 = verf.f32.pop %v301
    %v304 = vadd.f32 %v302, 1.0
    %v305 = vadd.f32 %v303, 1.0
    %v306 = vmul.f32 %v298, %v304
    %v307 = vmul.f32 %v299, %v305
    %v308 = vld [vmem:[#allocation7 + $0x20] sm:$0x1]
    %v309 = vld [vmem:[#allocation7 + $0x28] sm:$0x1]
    %v310 = vsel %vm71, %v306, 0.0
    %311 = vadd.xlane.f32.xlu0 %v310
    %v312 = vpop.xlane.xlu0 %311
    %v313 = vsel %vm71, %v307, 0.0
    %314 = vadd.xlane.f32.xlu0 %v313
    %v315 = vpop.xlane.xlu0 %314
    %v316 = vmul.f32 %v306, %v306
    %v317 = vmul.f32 %v307, %v307
    %v318 = vsel %vm71, %v316, 0.0
    %319 = vadd.xlane.f32.xlu0 %v318
    %v320 = vpop.xlane.xlu0 %319
    %v321 = vsel %vm71, %v317, 0.0
    %322 = vadd.xlane.f32.xlu0 %v321
    %v323 = vpop.xlane.xlu0 %322
    %v324 = vmul.f32 %v312, 0.015625
    %v325 = vmul.f32 %v315, 0.015625
    %v326 = vmul.f32 %v320, 0.015625
    %v327 = vmul.f32 %v323, 0.015625
    %v328 = vmul.f32 %v324, %v324
    %v329 = vmul.f32 %v325, %v325
    %v330 = vsub.f32 %v326, %v328
    %v331 = vsub.f32 %v327, %v329
    %v332 = vmax.f32 %v330, 0.0
    %v333 = vmax.f32 %v331, 0.0
    %v334 = vsub.f32 %v306, %v324
    %v335 = vsub.f32 %v307, %v325
    %v336 = vadd.f32 %v332, 1e-05
    %v337 = vadd.f32 %v333, 1e-05
    %v338 = vrsqrt.pop %v336
    %v339 = vrsqrt.pop %v337
    %v340 = vmul.f32 %v334, %v338
    %v341 = vmul.f32 %v335, %v339
    %v342 = vlaneseq
    %v343 = vshrl.u32 %v342, 7
    %v344 = vsub.s32 0, %v343
    %v345 = vrot.slane %v308, %v344
    %v346 = vmul.f32 %v340, %v345
    %v347 = vmul.f32 %v341, %v345
    %v348 = vlaneseq
    %v349 = vshrl.u32 %v348, 7
    %v350 = vsub.s32 0, %v349
    %v351 = vrot.slane %v309, %v350
    %v352 = vadd.f32 %v346, %v351
    %v353 = vadd.f32 %v347, %v351
    %v354 = vadd.f32 %v56, %v352
    %v355 = vadd.f32 %v57, %v353
    %v356 = vld [vmem:[#allocation5 + $0x50] sm:$0xff]
    %v357 = vld [vmem:[#allocation5 + $0x58] sm:$0xff]
    %v358 = vld [vmem:[#allocation5 + $0x60] sm:$0xff]
    %v359 = vld [vmem:[#allocation5 + $0x68] sm:$0xff]
    %v360 = vld [vmem:[#allocation5 + $0x70] sm:$0xff]
    %v361 = vld [vmem:[#allocation5 + $0x78] sm:$0xff]
    %v362 = vld [vmem:[#allocation5 + $0x80] sm:$0xff]
    %v363 = vld [vmem:[#allocation5 + $0x88] sm:$0xff]
    %v364 = vld [vmem:[#allocation7 + $0x30] sm:$0x1]
    %v365 = vlaneseq
    %v366 = vshrl.u32 %v365, 7
    %v367 = vsub.s32 0, %v366
    %v368 = vrot.slane %v364, %v367
    %v370 = vsel %vm71, %v354, 0
    %v373 = vsel %vm71, %v355, 0
    %375 = vmatprep.subr.mxu0 0.0
    %376 = vmatpush1.msra.mxu0 %v356
    %377 = vmatprep.subr.mxu0 0.0
    %378 = vmatpush1.msra.mxu0 %v357
    %379 = vmatprep.subr.mxu0 0.0
    %380 = vmatpush1.msra.mxu0 %v358
    %381 = vmatprep.subr.mxu0 0.0
    %382 = vmatpush1.msra.mxu0 %v359
    %383 = vmatprep.subr.mxu0 0.0
    %384 = vmatpush1.msra.mxu0 %v360
    %385 = vmatprep.subr.mxu0 0.0
    %386 = vmatpush1.msra.mxu0 %v361
    %387 = vmatprep.subr.mxu0 0.0
    %388 = vmatpush1.msra.mxu0 %v362
    %389 = vmatprep.subr.mxu0 0.0
    %390 = vmatpush1.msra.mxu0 %v363
    %391 = vmatprep.subr.mxu0 0.0
    %392 = vmatpush1.msra.mxu0 0.0
    %393 = vmatprep.subr.mxu0 0.0
    %394 = vmatpush1.msra.mxu0 0.0
    %395 = vmatprep.subr.mxu0 0.0
    %396 = vmatpush1.msra.mxu0 0.0
    %397 = vmatprep.subr.mxu0 0.0
    %398 = vmatpush1.msra.mxu0 0.0
    %399 = vmatprep.subr.mxu0 0.0
    %400 = vmatpush1.msra.mxu0 0.0
    %401 = vmatprep.subr.mxu0 0.0
    %402 = vmatpush1.msra.mxu0 0.0
    %403 = vmatprep.subr.mxu0 0.0
    %404 = vmatpush1.msra.mxu0 0.0
    %405 = vmatprep.subr.mxu0 0.0
    %406 = vmatpush1.msra.mxu0 0.0
    %407 = vmatprep.subr.mxu0 0.0
    %408 = vmatpush1.msra.mxu0 0.0
    %409 = vmatprep.subr.mxu0 0.0
    %410 = vmatpush1.msra.mxu0 0.0
    %411 = vmatprep.subr.mxu0 0.0
    %412 = vmatpush1.msra.mxu0 0.0
    %413 = vmatprep.subr.mxu0 0.0
    %414 = vmatpush1.msra.mxu0 0.0
    %415 = vmatprep.subr.mxu0 0.0
    %416 = vmatpush1.msra.mxu0 0.0
    %417 = vmatprep.subr.mxu0 0.0
    %418 = vmatpush1.msra.mxu0 0.0
    %419 = vmatprep.subr.mxu0 0.0
    %420 = vmatpush1.msra.mxu0 0.0
    %421 = vmatprep.subr.mxu0 0.0
    %422 = vmatpush1.msra.mxu0 0.0
    %423 = vmatprep.subr.mxu0 0.0
    %424 = vmatpush1.msra.mxu0 0.0
    %425 = vmatprep.subr.mxu0 0.0
    %426 = vmatpush1.msra.mxu0 0.0
    %427 = vmatprep.subr.mxu0 0.0
    %428 = vmatpush1.msra.mxu0 0.0
    %429 = vmatprep.subr.mxu0 0.0
    %430 = vmatpush1.msra.mxu0 0.0
    %431 = vmatprep.subr.mxu0 0.0
    %432 = vmatpush1.msra.mxu0 0.0
    %433 = vmatprep.subr.mxu0 0.0
    %434 = vmatpush1.msra.mxu0 0.0
    %435 = vmatprep.subr.mxu0 0.0
    %436 = vmatpush1.msra.mxu0 0.0
    %437 = vmatprep.subr.mxu0 0.0
    %438 = vmatpush1.msra.mxu0 0.0
    %439 = vmatprep.mubr.f32.mxu0 0.0
    %440 = vmatmul.mubr.f32.gmra.mrb[0].mxu0 %v370
    %v441 = vpop.f32.mrb[0].mxu0
    %v442 = vadd.f32 %v368, %v441
    %v443 = vpop.f32.mrb[0].mxu0
    %444 = vmatprep.mubr.f32.mxu0 0.0
    %445 = vmatmul.mubr.f32.gmra.mrb[0].mxu0 %v373
    %v446 = vpop.f32.mrb[0].mxu0
    %v447 = vadd.f32 %v368, %v446
    %v448 = vpop.f32.mrb[0].mxu0
    %449 = vdwg.mxu0
    %v450 = vld [vmem:[#allocation7 + $0x38] sm:$0x1]
    %v451 = vld [vmem:[#allocation7 + $0x40] sm:$0x1]
    %vm452 = vcmask 252928
    %v453 = vsel %vm452, %v442, 0.0
    %454 = vadd.xlane.f32.xlu0 %v453
    %v455 = vpop.xlane.xlu0 %454
    %v456 = vsel %vm452, %v447, 0.0
    %457 = vadd.xlane.f32.xlu0 %v456
    %v458 = vpop.xlane.xlu0 %457
    %v459 = vmul.f32 %v442, %v442
    %v460 = vmul.f32 %v447, %v447
    %v461 = vsel %vm452, %v459, 0.0
    %462 = vadd.xlane.f32.xlu0 %v461
    %v463 = vpop.xlane.xlu0 %462
    %v464 = vsel %vm452, %v460, 0.0
    %465 = vadd.xlane.f32.xlu0 %v464
    %v466 = vpop.xlane.xlu0 %465
    %v467 = vmul.f32 %v455, 0.032258064
    %v468 = vmul.f32 %v458, 0.032258064
    %v469 = vmul.f32 %v463, 0.032258064
    %v470 = vmul.f32 %v466, 0.032258064
    %v471 = vmul.f32 %v467, %v467
    %v472 = vmul.f32 %v468, %v468
    %v473 = vsub.f32 %v469, %v471
    %v474 = vsub.f32 %v470, %v472
    %v475 = vmax.f32 %v473, 0.0
    %v476 = vmax.f32 %v474, 0.0
    %v477 = vsub.f32 %v442, %v467
    %v478 = vsub.f32 %v447, %v468
    %v479 = vadd.f32 %v475, 1e-05
    %v480 = vadd.f32 %v476, 1e-05
    %v481 = vrsqrt.pop %v479
    %v482 = vrsqrt.pop %v480
    %v483 = vmul.f32 %v477, %v481
    %v484 = vmul.f32 %v478, %v482
    %v485 = vlaneseq
    %v486 = vshrl.u32 %v485, 7
    %v487 = vsub.s32 0, %v486
    %v488 = vrot.slane %v450, %v487
    %v489 = vmul.f32 %v483, %v488
    %v490 = vmul.f32 %v484, %v488
    %v491 = vlaneseq
    %v492 = vshrl.u32 %v491, 7
    %v493 = vsub.s32 0, %v492
    %v494 = vrot.slane %v451, %v493
    %v495 = vadd.f32 %v489, %v494
    %v496 = vadd.f32 %v490, %v494
    %v497 = vld [vmem:[#allocation5 + $0x90] sm:$0xff]
    %v498 = vld [vmem:[#allocation5 + $0x98] sm:$0xff]
    %v499 = vld [vmem:[#allocation5 + $0xa0] sm:$0xff]
    %v500 = vld [vmem:[#allocation5 + $0xa8] sm:$0x7f]
    %v501 = vld [vmem:[#allocation7 + $0x48] sm:$0x1]
    %v502 = vlaneseq
    %v503 = vshrl.u32 %v502, 7
    %v504 = vsub.s32 0, %v503
    %v505 = vrot.slane %v501, %v504
    %v507 = vsel %vm452, %v495, 0
    %v510 = vsel %vm452, %v496, 0
    %vm512 = vcmask 1046528
    %v514 = vsel %vm512, %v500, 0
    %516 = vmatprep.subr.mxu0 0.0
    %517 = vmatpush1.msra.mxu0 %v497
    %518 = vmatprep.subr.mxu0 0.0
    %519 = vmatpush1.msra.mxu0 %v498
    %520 = vmatprep.subr.mxu0 0.0
    %521 = vmatpush1.msra.mxu0 %v499
    %522 = vmatprep.subr.mxu0 0.0
    %523 = vmatpush1.msra.mxu0 %v514
    %524 = vmatprep.subr.mxu0 0.0
    %525 = vmatpush1.msra.mxu0 0.0
    %526 = vmatprep.subr.mxu0 0.0
    %527 = vmatpush1.msra.mxu0 0.0
    %528 = vmatprep.subr.mxu0 0.0
    %529 = vmatpush1.msra.mxu0 0.0
    %530 = vmatprep.subr.mxu0 0.0
    %531 = vmatpush1.msra.mxu0 0.0
    %532 = vmatprep.subr.mxu0 0.0
    %533 = vmatpush1.msra.mxu0 0.0
    %534 = vmatprep.subr.mxu0 0.0
    %535 = vmatpush1.msra.mxu0 0.0
    %536 = vmatprep.subr.mxu0 0.0
    %537 = vmatpush1.msra.mxu0 0.0
    %538 = vmatprep.subr.mxu0 0.0
    %539 = vmatpush1.msra.mxu0 0.0
    %540 = vmatprep.subr.mxu0 0.0
    %541 = vmatpush1.msra.mxu0 0.0
    %542 = vmatprep.subr.mxu0 0.0
    %543 = vmatpush1.msra.mxu0 0.0
    %544 = vmatprep.subr.mxu0 0.0
    %545 = vmatpush1.msra.mxu0 0.0
    %546 = vmatprep.subr.mxu0 0.0
    %547 = vmatpush1.msra.mxu0 0.0
    %548 = vmatprep.subr.mxu0 0.0
    %549 = vmatpush1.msra.mxu0 0.0
    %550 = vmatprep.subr.mxu0 0.0
    %551 = vmatpush1.msra.mxu0 0.0
    %552 = vmatprep.subr.mxu0 0.0
    %553 = vmatpush1.msra.mxu0 0.0
    %554 = vmatprep.subr.mxu0 0.0
    %555 = vmatpush1.msra.mxu0 0.0
    %556 = vmatprep.subr.mxu0 0.0
    %557 = vmatpush1.msra.mxu0 0.0
    %558 = vmatprep.subr.mxu0 0.0
    %559 = vmatpush1.msra.mxu0 0.0
    %560 = vmatprep.subr.mxu0 0.0
    %561 = vmatpush1.msra.mxu0 0.0
    %562 = vmatprep.subr.mxu0 0.0
    %563 = vmatpush1.msra.mxu0 0.0
    %564 = vmatprep.subr.mxu0 0.0
    %565 = vmatpush1.msra.mxu0 0.0
    %566 = vmatprep.subr.mxu0 0.0
    %567 = vmatpush1.msra.mxu0 0.0
    %568 = vmatprep.subr.mxu0 0.0
    %569 = vmatpush1.msra.mxu0 0.0
    %570 = vmatprep.subr.mxu0 0.0
    %571 = vmatpush1.msra.mxu0 0.0
    %572 = vmatprep.subr.mxu0 0.0
    %573 = vmatpush1.msra.mxu0 0.0
    %574 = vmatprep.subr.mxu0 0.0
    %575 = vmatpush1.msra.mxu0 0.0
    %576 = vmatprep.subr.mxu0 0.0
    %577 = vmatpush1.msra.mxu0 0.0
    %578 = vmatprep.subr.mxu0 0.0
    %579 = vmatpush1.msra.mxu0 0.0
    %580 = vmatprep.mubr.f32.mxu0 0.0
    %581 = vmatmul.mubr.f32.gmra.mrb[0].mxu0 %v507
    %v582 = vpop.f32.mrb[0].mxu0
    %v583 = vadd.f32 %v505, %v582
    %v584 = vpop.f32.mrb[0].mxu0
    %585 = vmatprep.mubr.f32.mxu0 0.0
    %586 = vmatmul.mubr.f32.gmra.mrb[0].mxu0 %v510
    %v587 = vpop.f32.mrb[0].mxu0
    %v588 = vadd.f32 %v505, %v587
    %v589 = vpop.f32.mrb[0].mxu0
    %590 = vdwg.mxu0
    %v591 = vmul.f32 %v583, 0.5
    %v592 = vmul.f32 %v588, 0.5
    %v593 = vmul.f32 %v583, 0.70710677
    %v594 = vmul.f32 %v588, 0.70710677
    %v595 = verf.f32.pop %v593
    %v596 = verf.f32.pop %v594
    %v597 = vadd.f32 %v595, 1.0
    %v598 = vadd.f32 %v596, 1.0
    %v599 = vmul.f32 %v591, %v597
    %v600 = vmul.f32 %v592, %v598
    %v601 = vld [vmem:[#allocation7 + $0x50] sm:$0x1]
    %v602 = vld [vmem:[#allocation7 + $0x58] sm:$0x1]
    %vm603 = vcmask 56320
    %v604 = vsel %vm603, %v599, 0.0
    %605 = vadd.xlane.f32.xlu0 %v604
    %v606 = vpop.xlane.xlu0 %605
    %v607 = vsel %vm603, %v600, 0.0
    %608 = vadd.xlane.f32.xlu0 %v607
    %v609 = vpop.xlane.xlu0 %608
    %v610 = vmul.f32 %v599, %v599
    %v611 = vmul.f32 %v600, %v600
    %v612 = vsel %vm603, %v610, 0.0
    %613 = vadd.xlane.f32.xlu0 %v612
    %v614 = vpop.xlane.xlu0 %613
    %v615 = vsel %vm603, %v611, 0.0
    %616 = vadd.xlane.f32.xlu0 %v615
    %v617 = vpop.xlane.xlu0 %616
    %v618 = vmul.f32 %v606, 0.14285715
    %v619 = vmul.f32 %v609, 0.14285715
    %v620 = vmul.f32 %v614, 0.14285715
    %v621 = vmul.f32 %v617, 0.14285715
    %v622 = vmul.f32 %v618, %v618
    %v623 = vmul.f32 %v619, %v619
    %v624 = vsub.f32 %v620, %v622
    %v625 = vsub.f32 %v621, %v623
    %v626 = vmax.f32 %v624, 0.0
    %v627 = vmax.f32 %v625, 0.0
    %v628 = vsub.f32 %v599, %v618
    %v629 = vsub.f32 %v600, %v619
    %v630 = vadd.f32 %v626, 1e-05
    %v631 = vadd.f32 %v627, 1e-05
    %v632 = vrsqrt.pop %v630
    %v633 = vrsqrt.pop %v631
    %v634 = vmul.f32 %v628, %v632
    %v635 = vmul.f32 %v629, %v633
    %v636 = vlaneseq
    %v637 = vshrl.u32 %v636, 7
    %v638 = vsub.s32 0, %v637
    %v639 = vrot.slane %v601, %v638
    %v640 = vmul.f32 %v634, %v639
    %v641 = vmul.f32 %v635, %v639
    %v642 = vlaneseq
    %v643 = vshrl.u32 %v642, 7
    %v644 = vsub.s32 0, %v643
    %v645 = vrot.slane %v602, %v644
    %v646 = vadd.f32 %v640, %v645
    %v647 = vadd.f32 %v641, %v645
    %v648 = vld [vmem:[#allocation5 + $0xb0] sm:$0x7f]
    %v649 = vld [vmem:[#allocation7 + $0x60] sm:$0x1]
    %v650 = vlaneseq
    %v651 = vshrl.u32 %v650, 7
    %v652 = vsub.s32 0, %v651
    %v653 = vrot.slane %v649, %v652
    %v655 = vsel %vm603, %v646, 0
    %v658 = vsel %vm603, %v647, 0
    %v661 = vsel %vm512, %v648, 0
    %663 = vmatprep.subr.mxu0 0.0
    %664 = vmatpush1.msra.mxu0 %v661
    %665 = vmatprep.subr.mxu0 0.0
    %666 = vmatpush1.msra.mxu0 0.0
    %667 = vmatprep.subr.mxu0 0.0
    %668 = vmatpush1.msra.mxu0 0.0
    %669 = vmatprep.subr.mxu0 0.0
    %670 = vmatpush1.msra.mxu0 0.0
    %671 = vmatprep.subr.mxu0 0.0
    %672 = vmatpush1.msra.mxu0 0.0
    %673 = vmatprep.subr.mxu0 0.0
    %674 = vmatpush1.msra.mxu0 0.0
    %675 = vmatprep.subr.mxu0 0.0
    %676 = vmatpush1.msra.mxu0 0.0
    %677 = vmatprep.subr.mxu0 0.0
    %678 = vmatpush1.msra.mxu0 0.0
    %679 = vmatprep.subr.mxu0 0.0
    %680 = vmatpush1.msra.mxu0 0.0
    %681 = vmatprep.subr.mxu0 0.0
    %682 = vmatpush1.msra.mxu0 0.0
    %683 = vmatprep.subr.mxu0 0.0
    %684 = vmatpush1.msra.mxu0 0.0
    %685 = vmatprep.subr.mxu0 0.0
    %686 = vmatpush1.msra.mxu0 0.0
    %687 = vmatprep.subr.mxu0 0.0
    %688 = vmatpush1.msra.mxu0 0.0
    %689 = vmatprep.subr.mxu0 0.0
    %690 = vmatpush1.msra.mxu0 0.0
    %691 = vmatprep.subr.mxu0 0.0
    %692 = vmatpush1.msra.mxu0 0.0
    %693 = vmatprep.subr.mxu0 0.0
    %694 = vmatpush1.msra.mxu0 0.0
    %695 = vmatprep.subr.mxu0 0.0
    %696 = vmatpush1.msra.mxu0 0.0
    %697 = vmatprep.subr.mxu0 0.0
    %698 = vmatpush1.msra.mxu0 0.0
    %699 = vmatprep.subr.mxu0 0.0
    %700 = vmatpush1.msra.mxu0 0.0
    %701 = vmatprep.subr.mxu0 0.0
    %702 = vmatpush1.msra.mxu0 0.0
    %703 = vmatprep.subr.mxu0 0.0
    %704 = vmatpush1.msra.mxu0 0.0
    %705 = vmatprep.subr.mxu0 0.0
    %706 = vmatpush1.msra.mxu0 0.0
    %707 = vmatprep.subr.mxu0 0.0
    %708 = vmatpush1.msra.mxu0 0.0
    %709 = vmatprep.subr.mxu0 0.0
    %710 = vmatpush1.msra.mxu0 0.0
    %711 = vmatprep.subr.mxu0 0.0
    %712 = vmatpush1.msra.mxu0 0.0
    %713 = vmatprep.subr.mxu0 0.0
    %714 = vmatpush1.msra.mxu0 0.0
    %715 = vmatprep.subr.mxu0 0.0
    %716 = vmatpush1.msra.mxu0 0.0
    %717 = vmatprep.subr.mxu0 0.0
    %718 = vmatpush1.msra.mxu0 0.0
    %719 = vmatprep.subr.mxu0 0.0
    %720 = vmatpush1.msra.mxu0 0.0
    %721 = vmatprep.subr.mxu0 0.0
    %722 = vmatpush1.msra.mxu0 0.0
    %723 = vmatprep.subr.mxu0 0.0
    %724 = vmatpush1.msra.mxu0 0.0
    %725 = vmatprep.subr.mxu0 0.0
    %726 = vmatpush1.msra.mxu0 0.0
    %727 = vmatprep.mubr.f32.mxu0 0.0
    %728 = vmatmul.mubr.f32.gmra.mrb[0].mxu0 %v655
    %v729 = vpop.f32.mrb[0].mxu0
    %v730 = vadd.f32 %v653, %v729
    %v731 = vpop.f32.mrb[0].mxu0
    %732 = vmatprep.mubr.f32.mxu0 0.0
    %733 = vmatmul.mubr.f32.gmra.mrb[0].mxu0 %v658
    %v734 = vpop.f32.mrb[0].mxu0
    %v735 = vadd.f32 %v653, %v734
    %v736 = vpop.f32.mrb[0].mxu0
    %737 = vdwg.mxu0
    %v738 = vmul.f32 %v730, 0.5
    %v739 = vmul.f32 %v735, 0.5
    %v740 = vmul.f32 %v730, 0.70710677
    %v741 = vmul.f32 %v735, 0.70710677
    %v742 = verf.f32.pop %v740
    %v743 = verf.f32.pop %v741
    %v744 = vadd.f32 %v742, 1.0
    %v745 = vadd.f32 %v743, 1.0
    %v746 = vmul.f32 %v738, %v744
    %v747 = vmul.f32 %v739, %v745
    %v748 = vld [vmem:[#allocation7 + $0x68] sm:$0x1]
    %v749 = vld [vmem:[#allocation7 + $0x70] sm:$0x1]
    %v750 = vsel %vm452, %v746, 0.0
    %751 = vadd.xlane.f32.xlu0 %v750
    %v752 = vpop.xlane.xlu0 %751
    %v753 = vsel %vm452, %v747, 0.0
    %754 = vadd.xlane.f32.xlu0 %v753
    %v755 = vpop.xlane.xlu0 %754
    %v756 = vmul.f32 %v746, %v746
    %v757 = vmul.f32 %v747, %v747
    %v758 = vsel %vm452, %v756, 0.0
    %759 = vadd.xlane.f32.xlu0 %v758
    %v760 = vpop.xlane.xlu0 %759
    %v761 = vsel %vm452, %v757, 0.0
    %762 = vadd.xlane.f32.xlu0 %v761
    %v763 = vpop.xlane.xlu0 %762
    %v764 = vmul.f32 %v752, 0.032258064
    %v765 = vmul.f32 %v755, 0.032258064
    %v766 = vmul.f32 %v760, 0.032258064
    %v767 = vmul.f32 %v763, 0.032258064
    %v768 = vmul.f32 %v764, %v764
    %v769 = vmul.f32 %v765, %v765
    %v770 = vsub.f32 %v766, %v768
    %v771 = vsub.f32 %v767, %v769
    %v772 = vmax.f32 %v770, 0.0
    %v773 = vmax.f32 %v771, 0.0
    %v774 = vsub.f32 %v746, %v764
    %v775 = vsub.f32 %v747, %v765
    %v776 = vadd.f32 %v772, 1e-05
    %v777 = vadd.f32 %v773, 1e-05
    %v778 = vrsqrt.pop %v776
    %v779 = vrsqrt.pop %v777
    %v780 = vmul.f32 %v774, %v778
    %v781 = vmul.f32 %v775, %v779
    %v782 = vlaneseq
    %v783 = vshrl.u32 %v782, 7
    %v784 = vsub.s32 0, %v783
    %v785 = vrot.slane %v748, %v784
    %v786 = vmul.f32 %v780, %v785
    %v787 = vmul.f32 %v781, %v785
    %v788 = vlaneseq
    %v789 = vshrl.u32 %v788, 7
    %v790 = vsub.s32 0, %v789
    %v791 = vrot.slane %v749, %v790
    %v792 = vadd.f32 %v786, %v791
    %v793 = vadd.f32 %v787, %v791
    %v794 = vadd.f32 %v495, %v792
    %v795 = vadd.f32 %v496, %v793
    %v796 = vld [vmem:[#allocation5 + $0xb8] sm:$0xff]
    %v797 = vld [vmem:[#allocation5 + $0xc0] sm:$0xff]
    %v798 = vld [vmem:[#allocation5 + $0xc8] sm:$0xff]
    %v799 = vld [vmem:[#allocation5 + $0xd0] sm:$0x7f]
    %v800 = vld [vmem:[#allocation7 + $0x78] sm:$0x1]
    %v801 = vlaneseq
    %v802 = vshrl.u32 %v801, 7
    %v803 = vsub.s32 0, %v802
    %v804 = vrot.slane %v800, %v803
    %v806 = vsel %vm452, %v794, 0
    %v809 = vsel %vm452, %v795, 0
    %v812 = vsel %vm512, %v799, 0
    %814 = vmatprep.subr.mxu0 0.0
    %815 = vmatpush1.msra.mxu0 %v796
    %816 = vmatprep.subr.mxu0 0.0
    %817 = vmatpush1.msra.mxu0 %v797
    %818 = vmatprep.subr.mxu0 0.0
    %819 = vmatpush1.msra.mxu0 %v798
    %820 = vmatprep.subr.mxu0 0.0
    %821 = vmatpush1.msra.mxu0 %v812
    %822 = vmatprep.subr.mxu0 0.0
    %823 = vmatpush1.msra.mxu0 0.0
    %824 = vmatprep.subr.mxu0 0.0
    %825 = vmatpush1.msra.mxu0 0.0
    %826 = vmatprep.subr.mxu0 0.0
    %827 = vmatpush1.msra.mxu0 0.0
    %828 = vmatprep.subr.mxu0 0.0
    %829 = vmatpush1.msra.mxu0 0.0
    %830 = vmatprep.subr.mxu0 0.0
    %831 = vmatpush1.msra.mxu0 0.0
    %832 = vmatprep.subr.mxu0 0.0
    %833 = vmatpush1.msra.mxu0 0.0
    %834 = vmatprep.subr.mxu0 0.0
    %835 = vmatpush1.msra.mxu0 0.0
    %836 = vmatprep.subr.mxu0 0.0
    %837 = vmatpush1.msra.mxu0 0.0
    %838 = vmatprep.subr.mxu0 0.0
    %839 = vmatpush1.msra.mxu0 0.0
    %840 = vmatprep.subr.mxu0 0.0
    %841 = vmatpush1.msra.mxu0 0.0
    %842 = vmatprep.subr.mxu0 0.0
    %843 = vmatpush1.msra.mxu0 0.0
    %844 = vmatprep.subr.mxu0 0.0
    %845 = vmatpush1.msra.mxu0 0.0
    %846 = vmatprep.subr.mxu0 0.0
    %847 = vmatpush1.msra.mxu0 0.0
    %848 = vmatprep.subr.mxu0 0.0
    %849 = vmatpush1.msra.mxu0 0.0
    %850 = vmatprep.subr.mxu0 0.0
    %851 = vmatpush1.msra.mxu0 0.0
    %852 = vmatprep.subr.mxu0 0.0
    %853 = vmatpush1.msra.mxu0 0.0
    %854 = vmatprep.subr.mxu0 0.0
    %855 = vmatpush1.msra.mxu0 0.0
    %856 = vmatprep.subr.mxu0 0.0
    %857 = vmatpush1.msra.mxu0 0.0
    %858 = vmatprep.subr.mxu0 0.0
    %859 = vmatpush1.msra.mxu0 0.0
    %860 = vmatprep.subr.mxu0 0.0
    %861 = vmatpush1.msra.mxu0 0.0
    %862 = vmatprep.subr.mxu0 0.0
    %863 = vmatpush1.msra.mxu0 0.0
    %864 = vmatprep.subr.mxu0 0.0
    %865 = vmatpush1.msra.mxu0 0.0
    %866 = vmatprep.subr.mxu0 0.0
    %867 = vmatpush1.msra.mxu0 0.0
    %868 = vmatprep.subr.mxu0 0.0
    %869 = vmatpush1.msra.mxu0 0.0
    %870 = vmatprep.subr.mxu0 0.0
    %871 = vmatpush1.msra.mxu0 0.0
    %872 = vmatprep.subr.mxu0 0.0
    %873 = vmatpush1.msra.mxu0 0.0
    %874 = vmatprep.subr.mxu0 0.0
    %875 = vmatpush1.msra.mxu0 0.0
    %876 = vmatprep.subr.mxu0 0.0
    %877 = vmatpush1.msra.mxu0 0.0
    %878 = vmatprep.mubr.f32.mxu0 0.0
    %879 = vmatmul.mubr.f32.gmra.mrb[0].mxu0 %v806
    %v880 = vpop.f32.mrb[0].mxu0
    %v881 = vadd.f32 %v804, %v880
    %v882 = vpop.f32.mrb[0].mxu0
    %883 = vmatprep.mubr.f32.mxu0 0.0
    %884 = vmatmul.mubr.f32.gmra.mrb[0].mxu0 %v809
    %v885 = vpop.f32.mrb[0].mxu0
    %v886 = vadd.f32 %v804, %v885
    %v887 = vpop.f32.mrb[0].mxu0
    %888 = vdwg.mxu0
    %889 = vst [vmem:[#allocation8] sm:$0xff] %v881
    %890 = vst [vmem:[#allocation8 + $0x8] sm:$0xff] %v886
    // Predicated region
    $region26: #{tpu_custom_call.1} parent=1 // pred_check
      _
    $region27: #{tpu_custom_call.1} parent=1 // pred_check_branch
      %892 = sbr.rel (0) target = $region29
    $region28: #{tpu_custom_call.1} parent=1 // pred_region
      %s894 = ssub.s32 256, 256
      %895 = vsyncadd [#allocation4], %s894
      %s896 = sshll.u32 [#allocation8], 4
      %s897 = int_to_ptr.vmem [resolvable:$true] %s896
      %902 = dma.vmem_to_hbm [thread:$0]  %s897, 256, %s3, [#allocation4], 128, 128, 8
    $region29: #{tpu_custom_call.1} parent=1 // pred_fallthru
      _
    // Predicated region
    $region30: #{tpu_custom_call.1} parent=1 // pred_check
      _
    $region31: #{tpu_custom_call.1} parent=1 // pred_check_branch
      %904 = sbr.rel (0) target = $region33
    $region32: #{tpu_custom_call.1} parent=1 // pred_region
      %905 = dma.done [#allocation4], 256
    $region33: #{tpu_custom_call.1} parent=1 // pred_fallthru
      _
    %906 = vsyncpa [#allocation3], 1
    %907 = vsyncpa [#allocation6], 1
    %908 = vsyncpa [#allocation4], 1

</llo_original>
